<compile_context>
chip_gen: v6e
topology: v6e:2x2x1
jax: 0.10.0
libtpu: 0.0.40
codegen_flags: <defaults>
</compile_context>

<pallas_src>
import jax
import jax.numpy as jnp
from jax.experimental import pallas as pl
from jax.experimental.pallas import tpu as pltpu


def _linear_kernel(x_ref, w_ref, b_ref, o_ref):
    # x_ref: (tm, P*K)   packed row tile of cmps
    # w_ref: (P*K, P*E)  block-diagonal weight, (in, out) layout
    # b_ref: (1,  P*E)   tiled bias
    # o_ref: (tm, P*E)   lane-dense output tile
    acc = jnp.dot(x_ref[...], w_ref[...], preferred_element_type=jnp.float32)
    o_ref[...] = (acc + b_ref[...]).astype(o_ref.dtype)


def _round_up(x, m):
    return ((x + m - 1) // m) * m


def decomposition_embedding_forward(cmps, embedding_offsets, embedding_bias,
                                    *, block_rows=1024):
    """Pallas equivalent of DecompositionBasedEmbeddingSpace.forward.

    cmps:              (N, K) with K = 2*bitwidth (or bitwidth if baked)
    embedding_offsets: (E, K) PyTorch Linear weight layout
    embedding_bias:    (E,)
    returns:           (N, E) == cmps @ embedding_offsets.T + embedding_bias
    """
    N, K = cmps.shape
    E, K_w = embedding_offsets.shape
    assert K == K_w, "cmps last dim must match weight in_features"

    # Pack P original rows per 128-lane slab when K divides 128.
    P = (128 // K) if (K <= 128 and 128 % K == 0) else 1
    Kp, Ep = P * K, P * E

    # ---- hoisted, once per call (outside the sequential grid loop) ----
    w_t = embedding_offsets.T                                     # (K, E)
    if P > 1:
        # Block-diagonal expansion: W_bd[g*K+k, h*E+e] = (g==h) * W^T[k, e]
        w_bd = jnp.kron(jnp.eye(P, dtype=w_t.dtype), w_t)         # (P*K, P*E)
        b_bd = jnp.tile(embedding_bias, P).reshape(1, Ep)         # (1, P*E)
    else:
        w_bd = w_t                                                # (K, E)
        b_bd = embedding_bias.reshape(1, Ep)

    # ---- pack rows: (N, K) -> (Np, P*K).  Only pad to a multiple of P
    # (at most P-1 rows); the ragged row-tile tail is handled by Pallas
    # partial-block masking, so no full padding pass over the input. ----
    N_pack = _round_up(N, P)
    x = cmps if N_pack == N else jnp.pad(cmps, ((0, N_pack - N), (0, 0)))
    Np = N_pack // P
    x_packed = x.reshape(Np, Kp)                                  # free (row-major)

    # ---- row tile over packed rows (clamped for small inputs) ----
    tm = min(block_rows, _round_up(Np, 8))
    grid = (pl.cdiv(Np, tm),)

    out_packed = pl.pallas_call(
        _linear_kernel,
        out_shape=jax.ShapeDtypeStruct((Np, Ep), cmps.dtype),
        grid=grid,
        in_specs=[
            pl.BlockSpec((tm, Kp), lambda i: (i, 0)),   # packed cmps row tile
            pl.BlockSpec((Kp, Ep), lambda i: (0, 0)),   # block-diag weight, resident
            pl.BlockSpec((1, Ep), lambda i: (0, 0)),    # tiled bias, resident
        ],
        out_specs=pl.BlockSpec((tm, Ep), lambda i: (i, 0)),
        compiler_params=pltpu.CompilerParams(
            dimension_semantics=("parallel",),          # v7x: shard steps on 2 TCs
        ),
    )(x_packed, w_bd, b_bd)

    # Unpack: (Np, P*E) -> (Np*P, E) is a free row-major reshape; drop the
    # (<= P-1) zero-padded rows if any.
    out = out_packed.reshape(Np * P, E)
    return out if N_pack == N else out[:N]


if __name__ == "__main__":
    key = jax.random.PRNGKey(0)
    k_w, k_b, k_x, k_w2, k_b2, k_x2 = jax.random.split(key, 6)

    # ---- main case: bitwidth=8 -> K=16 (packed path, P=8), E=32, ragged N ----
    bitwidth = 8
    embedding_dims = 32
    in_features = 2 * bitwidth
    n_rows = 203                         # deliberately ragged (not multiple of 8)

    embedding_offsets = 0.01 * jax.random.normal(
        k_w, (embedding_dims, in_features), dtype=jnp.float32)
    embedding_bias = 0.01 * jax.random.normal(
        k_b, (embedding_dims,), dtype=jnp.float32)
    cmps = jax.random.normal(k_x, (n_rows, in_features), dtype=jnp.float32)

    out = decomposition_embedding_forward(cmps, embedding_offsets, embedding_bias)
    out = jax.block_until_ready(out)

    ref = cmps @ embedding_offsets.T + embedding_bias[None, :]
    assert out.shape == (n_rows, embedding_dims)
    assert jnp.allclose(out, ref, atol=1e-5, rtol=1e-5)

    # ---- fallback case: K does not divide 128 (bitwidth=5 -> K=10, P=1) ----
    bitwidth2, embedding_dims2, n_rows2 = 5, 32, 77
    w2 = 0.01 * jax.random.normal(
        k_w2, (embedding_dims2, 2 * bitwidth2), dtype=jnp.float32)
    b2 = 0.01 * jax.random.normal(k_b2, (embedding_dims2,), dtype=jnp.float32)
    x2 = jax.random.normal(k_x2, (n_rows2, 2 * bitwidth2), dtype=jnp.float32)

    out2 = jax.block_until_ready(decomposition_embedding_forward(x2, w2, b2))
    ref2 = x2 @ w2.T + b2[None, :]
    assert out2.shape == (n_rows2, embedding_dims2)
    assert jnp.allclose(out2, ref2, atol=1e-5, rtol=1e-5)

    # NOTE: at these demo sizes a plain XLA dot would be faster than any kernel;
    # the Pallas path pays off for N in the tens of thousands of rows.
    print("KERNEL_OK")
</pallas_src>

<mosaic_0001>
module attributes {stable_mosaic.version = 11 : i64} {
  func.func @_linear_kernel(%arg0: i32, %arg1: memref<32x128xf32, #tpu.memory_space<vmem>>, %arg2: memref<128x256xf32, #tpu.memory_space<vmem>>, %arg3: memref<1x256xf32, #tpu.memory_space<vmem>>, %arg4: memref<32x256xf32, #tpu.memory_space<vmem>>) attributes {dimension_semantics = [#tpu.dimension_semantics<parallel>], iteration_bounds = array<i64: 1>, scalar_prefetch = 0 : i64, scratch_operands = 0 : i64, tpu.core_type = #tpu.core_type<tc>, window_params = [{transform_indices = @transform_0, window_bounds = array<i64: 32, 128>}, {pipeline_mode = #tpu.pipeline_mode<synchronous>, transform_indices = @transform_1, window_bounds = array<i64: 128, 256>}, {pipeline_mode = #tpu.pipeline_mode<synchronous>, transform_indices = @transform_2, window_bounds = array<i64: 1, 256>}, {transform_indices = @transform_3, window_bounds = array<i64: 32, 256>}]} {
    %c0 = arith.constant 0 : index
    %c0_0 = arith.constant 0 : index
    %0 = vector.load %arg1[%c0, %c0_0] : memref<32x128xf32, #tpu.memory_space<vmem>>, vector<32x128xf32>
    %c0_1 = arith.constant 0 : index
    %c0_2 = arith.constant 0 : index
    %1 = vector.load %arg2[%c0_1, %c0_2] : memref<128x256xf32, #tpu.memory_space<vmem>>, vector<128x256xf32>
    %cst = arith.constant dense<0.000000e+00> : vector<32x256xf32>
    %2 = tpu.matmul %0, %1, %cst {dimension_numbers = #tpu.dot_dimension_numbers<[1], [0], [0], [1], [0, 0, 1, 1], [], []>} : vector<32x128xf32>, vector<128x256xf32>, vector<32x256xf32> -> vector<32x256xf32>
    %c0_3 = arith.constant 0 : index
    %c0_4 = arith.constant 0 : index
    %3 = vector.load %arg3[%c0_3, %c0_4] : memref<1x256xf32, #tpu.memory_space<vmem>>, vector<1x256xf32>
    %4 = vector.broadcast %3 : vector<1x256xf32> to vector<32x256xf32>
    %5 = arith.addf %2, %4 : vector<32x256xf32>
    %c0_5 = arith.constant 0 : index
    %c0_6 = arith.constant 0 : index
    %6 = vector.load %arg4[%c0_5, %c0_6] : memref<32x256xf32, #tpu.memory_space<vmem>>, vector<32x256xf32>
    tpu.vector_store %arg4[%c0_5, %c0_6], %5 {strides = array<i32>} : memref<32x256xf32, #tpu.memory_space<vmem>>, vector<32x256xf32>,
    return
  }
  func.func @transform_0(%arg0: i32) -> (i32, i32) {
    %c0_i32 = arith.constant 0 : i32
    %c0_i32_0 = arith.constant 0 : i32
    return %arg0, %c0_i32 : i32, i32
  }
  func.func @transform_1(%arg0: i32) -> (i32, i32) {
    %c0_i32 = arith.constant 0 : i32
    %c0_i32_0 = arith.constant 0 : i32
    %c0_i32_1 = arith.constant 0 : i32
    return %c0_i32, %c0_i32_0 : i32, i32
  }
  func.func @transform_2(%arg0: i32) -> (i32, i32) {
    %c0_i32 = arith.constant 0 : i32
    %c0_i32_0 = arith.constant 0 : i32
    %c0_i32_1 = arith.constant 0 : i32
    return %c0_i32, %c0_i32_0 : i32, i32
  }
  func.func @transform_3(%arg0: i32) -> (i32, i32) {
    %c0_i32 = arith.constant 0 : i32
    %c0_i32_0 = arith.constant 0 : i32
    return %arg0, %c0_i32 : i32, i32
  }
}

</mosaic_0001>

<llo_original>
// kernel: tpu_custom_call.1
$region0: #{tpu_custom_call.1}
  #allocation0 [shape = 'u32[]', space=smem, size = 0x4, offset = 0x4, fixed_abs, tag = 'smem constant byte address 0x4 - core index']
  #allocation1 [shape = 'u32[144,128]{1,0:T(1,128)}', space=vmem, size = 0x12000, scoped, tag = 'internal scratch']
  %s0 = inlined_call_operand.hbm [shape: f32[26,128], index: 0, kind: input, shape index: {}]
  %s1 = inlined_call_operand.hbm [shape: f32[128,256], index: 1, kind: input, shape index: {}]
  %s2 = inlined_call_operand.vmem [shape: f32[1,256], index: 2, kind: input, shape index: {}]
  %s3 = inlined_call_operand.hbm [shape: f32[26,256], index: 3, kind: output, shape index: {}]
  %s4 = sld [smem:[#allocation0]]
  $region30: #{tpu_custom_call.1} parent=0
    _
  %s6 = ssub.s32 1, %s4
  %s7 = scalar_select 0, %s6, %s4
  $region1: #{tpu_custom_call.1} parent=0
    #allocation2 [shape = 'u8[16384]{0}', space=vmem, size = 0x4000, scoped, tag = 'input window, operand 0, single buffered']
    #allocation3 [shape = 's32[1]{0}', space=sflag, size = 0x4, scoped, tag = 'scoped memory for tpu_custom_call.1']
    #allocation4 [shape = 's32[1]{0}', space=sflag, size = 0x4, scoped, tag = 'scoped memory for tpu_custom_call.1']
    #allocation5 [shape = 'u8[131072]{0}', space=vmem, size = 0x20000, scoped, tag = 'input window, operand 1, single buffered']
    #allocation6 [shape = 's32[1]{0}', space=sflag, size = 0x4, scoped, tag = 'scoped memory for tpu_custom_call.1']
    #allocation7 [shape = 'u8[32768]{0}', space=vmem, size = 0x8000, scoped, tag = 'output window, operand 0, single buffered']
    %8 = vsyncpa [#allocation3], 0
    %9 = vsyncpa [#allocation6], 0
    %10 = vsyncpa [#allocation4], 0
    // Predicated region
    $region2: #{tpu_custom_call.1} parent=1 // pred_check
      _
    $region3: #{tpu_custom_call.1} parent=1 // pred_check_branch
      %12 = sbr.rel (0) target = $region5
    $region4: #{tpu_custom_call.1} parent=1 // pred_region
      %s14 = ssub.s32 512, 512
      %15 = vsyncadd [#allocation3], %s14
      %s16 = sshll.u32 [#allocation2], 4
      %s17 = int_to_ptr.vmem [resolvable:$true] %s16
      %22 = dma.hbm_to_vmem [thread:$0]  %s0, 512, %s17, [#allocation3], 128, 128, 8
    $region5: #{tpu_custom_call.1} parent=1 // pred_fallthru
      _
    // Predicated region
    $region6: #{tpu_custom_call.1} parent=1 // pred_check
      _
    $region7: #{tpu_custom_call.1} parent=1 // pred_check_branch
      %24 = sbr.rel (0) target = $region9
    $region8: #{tpu_custom_call.1} parent=1 // pred_region
      %s26 = ssub.s32 4096, 4096
      %27 = vsyncadd [#allocation6], %s26
      %s28 = sshll.u32 [#allocation5], 4
      %s29 = int_to_ptr.vmem [resolvable:$true] %s28
      %34 = dma.hbm_to_vmem [thread:$0]  %s1, 4096, %s29, [#allocation6], 256, 256, 16
    $region9: #{tpu_custom_call.1} parent=1 // pred_fallthru
      _
    // Predicated region
    $region10: #{tpu_custom_call.1} parent=1 // pred_check
      _
    $region11: #{tpu_custom_call.1} parent=1 // pred_check_branch
      %36 = sbr.rel (0) target = $region13
    $region12: #{tpu_custom_call.1} parent=1 // pred_region
      _
    $region13: #{tpu_custom_call.1} parent=1 // pred_fallthru
      _
    // Predicated region
    $region14: #{tpu_custom_call.1} parent=1 // pred_check
      _
    $region15: #{tpu_custom_call.1} parent=1 // pred_check_branch
      %38 = sbr.rel (0) target = $region17
    $region16: #{tpu_custom_call.1} parent=1 // pred_region
      %39 = dma.done [#allocation3], 512
    $region17: #{tpu_custom_call.1} parent=1 // pred_fallthru
      _
    // Predicated region
    $region18: #{tpu_custom_call.1} parent=1 // pred_check
      _
    $region19: #{tpu_custom_call.1} parent=1 // pred_check_branch
      %41 = sbr.rel (0) target = $region21
    $region20: #{tpu_custom_call.1} parent=1 // pred_region
      %42 = dma.done [#allocation6], 4096
    $region21: #{tpu_custom_call.1} parent=1 // pred_fallthru
      _
    %v43 = vld [vmem:[#allocation2] sm:$0xff]
    %v44 = vld [vmem:[#allocation2 + $0x8] sm:$0xff]
    %v45 = vld [vmem:[#allocation2 + $0x10] sm:$0xff]
    %v46 = vld [vmem:[#allocation2 + $0x18] sm:$0xff]
    %v47 = vld [vmem:[#allocation5] sm:$0xff]
    %v48 = vld [vmem:[#allocation5 + $0x8] sm:$0xff]
    %v49 = vld [vmem:[#allocation5 + $0x10] sm:$0xff]
    %v50 = vld [vmem:[#allocation5 + $0x18] sm:$0xff]
    %v51 = vld [vmem:[#allocation5 + $0x20] sm:$0xff]
    %v52 = vld [vmem:[#allocation5 + $0x28] sm:$0xff]
    %v53 = vld [vmem:[#allocation5 + $0x30] sm:$0xff]
    %v54 = vld [vmem:[#allocation5 + $0x38] sm:$0xff]
    %v55 = vld [vmem:[#allocation5 + $0x40] sm:$0xff]
    %v56 = vld [vmem:[#allocation5 + $0x48] sm:$0xff]
    %v57 = vld [vmem:[#allocation5 + $0x50] sm:$0xff]
    %v58 = vld [vmem:[#allocation5 + $0x58] sm:$0xff]
    %v59 = vld [vmem:[#allocation5 + $0x60] sm:$0xff]
    %v60 = vld [vmem:[#allocation5 + $0x68] sm:$0xff]
    %v61 = vld [vmem:[#allocation5 + $0x70] sm:$0xff]
    %v62 = vld [vmem:[#allocation5 + $0x78] sm:$0xff]
    %v63 = vld [vmem:[#allocation5 + $0x80] sm:$0xff]
    %v64 = vld [vmem:[#allocation5 + $0x88] sm:$0xff]
    %v65 = vld [vmem:[#allocation5 + $0x90] sm:$0xff]
    %v66 = vld [vmem:[#allocation5 + $0x98] sm:$0xff]
    %v67 = vld [vmem:[#allocation5 + $0xa0] sm:$0xff]
    %v68 = vld [vmem:[#allocation5 + $0xa8] sm:$0xff]
    %v69 = vld [vmem:[#allocation5 + $0xb0] sm:$0xff]
    %v70 = vld [vmem:[#allocation5 + $0xb8] sm:$0xff]
    %v71 = vld [vmem:[#allocation5 + $0xc0] sm:$0xff]
    %v72 = vld [vmem:[#allocation5 + $0xc8] sm:$0xff]
    %v73 = vld [vmem:[#allocation5 + $0xd0] sm:$0xff]
    %v74 = vld [vmem:[#allocation5 + $0xd8] sm:$0xff]
    %v75 = vld [vmem:[#allocation5 + $0xe0] sm:$0xff]
    %v76 = vld [vmem:[#allocation5 + $0xe8] sm:$0xff]
    %v77 = vld [vmem:[#allocation5 + $0xf0] sm:$0xff]
    %v78 = vld [vmem:[#allocation5 + $0xf8] sm:$0xff]
    %v79 = vld [vmem:[%s2] sm:$0x3]
    %v81 = vlaneseq
    %v82 = vshrl.u32 %v81, 7
    %v83 = vsub.s32 0, %v82
    %v84 = vrot.slane %v79, %v83
    %v85 = vlaneseq
    %v86 = vshrl.u32 %v85, 7
    %v87 = vsub.s32 1, %v86
    %v88 = vrot.slane %v79, %v87
    %91 = vmatprep.subr.mxu0 %v78
    %92 = vmatpush1.msra.mxu0 %v77
    %93 = vmatprep.subr.mxu0 %v76
    %94 = vmatpush1.msra.mxu0 %v75
    %95 = vmatprep.subr.mxu0 %v74
    %96 = vmatpush1.msra.mxu0 %v73
    %97 = vmatprep.subr.mxu0 %v72
    %98 = vmatpush1.msra.mxu0 %v71
    %99 = vmatprep.subr.mxu0 %v70
    %100 = vmatpush1.msra.mxu0 %v69
    %101 = vmatprep.subr.mxu0 %v68
    %102 = vmatpush1.msra.mxu0 %v67
    %103 = vmatprep.subr.mxu0 %v66
    %104 = vmatpush1.msra.mxu0 %v65
    %105 = vmatprep.subr.mxu0 %v64
    %106 = vmatpush1.msra.mxu0 %v63
    %107 = vmatprep.subr.mxu0 %v62
    %108 = vmatpush1.msra.mxu0 %v61
    %109 = vmatprep.subr.mxu0 %v60
    %110 = vmatpush1.msra.mxu0 %v59
    %111 = vmatprep.subr.mxu0 %v58
    %112 = vmatpush1.msra.mxu0 %v57
    %113 = vmatprep.subr.mxu0 %v56
    %114 = vmatpush1.msra.mxu0 %v55
    %115 = vmatprep.subr.mxu0 %v54
    %116 = vmatpush1.msra.mxu0 %v53
    %117 = vmatprep.subr.mxu0 %v52
    %118 = vmatpush1.msra.mxu0 %v51
    %119 = vmatprep.subr.mxu0 %v50
    %120 = vmatpush1.msra.mxu0 %v49
    %121 = vmatprep.subr.mxu0 %v48
    %122 = vmatpush1.msra.mxu0 %v47
    %123 = vmatprep.subr.mxu0 0.0
    %124 = vmatpush2.msra.mxu0 0.0
    %125 = vmatprep.subr.mxu0 0.0
    %126 = vmatpush2.msra.mxu0 0.0
    %127 = vmatprep.subr.mxu0 0.0
    %128 = vmatpush2.msra.mxu0 0.0
    %129 = vmatprep.subr.mxu0 0.0
    %130 = vmatpush2.msra.mxu0 0.0
    %131 = vmatprep.subr.mxu0 0.0
    %132 = vmatpush2.msra.mxu0 0.0
    %133 = vmatprep.subr.mxu0 0.0
    %134 = vmatpush2.msra.mxu0 0.0
    %135 = vmatprep.subr.mxu0 0.0
    %136 = vmatpush2.msra.mxu0 0.0
    %137 = vmatprep.subr.mxu0 0.0
    %138 = vmatpush2.msra.mxu0 0.0
    %139 = vmatprep.subr.mxu0 0.0
    %140 = vmatpush2.msra.mxu0 0.0
    %141 = vmatprep.subr.mxu0 0.0
    %142 = vmatpush2.msra.mxu0 0.0
    %143 = vmatprep.subr.mxu0 0.0
    %144 = vmatpush2.msra.mxu0 0.0
    %145 = vmatprep.subr.mxu0 0.0
    %146 = vmatpush2.msra.mxu0 0.0
    %147 = vmatprep.subr.mxu0 0.0
    %148 = vmatpush2.msra.mxu0 0.0
    %149 = vmatprep.subr.mxu0 0.0
    %150 = vmatpush2.msra.mxu0 0.0
    %151 = vmatprep.subr.mxu0 0.0
    %152 = vmatpush2.msra.mxu0 0.0
    %153 = vmatprep.subr.mxu0 0.0
    %154 = vmatpush2.msra.mxu0 0.0
    %155 = vmatprep.mubr.f32.mxu0 0.0
    %156 = vmatmul.mubr.f32.gmra.mxu0 %v43
    %v157 = vpop.f32.mrf.mxu0
    %v158 = vadd.f32 %v84, %v157
    %v159 = vpop.f32.mrf.mxu0
    %v160 = vadd.f32 %v88, %v159
    %161 = vmatprep.mubr.f32.mxu0 0.0
    %162 = vmatmul.mubr.f32.gmra.mxu0 %v44
    %v163 = vpop.f32.mrf.mxu0
    %v164 = vadd.f32 %v84, %v163
    %v165 = vpop.f32.mrf.mxu0
    %v166 = vadd.f32 %v88, %v165
    %167 = vmatprep.mubr.f32.mxu0 0.0
    %168 = vmatmul.mubr.f32.gmra.mxu0 %v45
    %v169 = vpop.f32.mrf.mxu0
    %v170 = vadd.f32 %v84, %v169
    %v171 = vpop.f32.mrf.mxu0
    %v172 = vadd.f32 %v88, %v171
    %173 = vmatprep.mubr.f32.mxu0 0.0
    %174 = vmatmul.mubr.f32.gmra.mxu0 %v46
    %v175 = vpop.f32.mrf.mxu0
    %v176 = vadd.f32 %v84, %v175
    %v177 = vpop.f32.mrf.mxu0
    %v178 = vadd.f32 %v88, %v177
    %179 = vdwg.mxu0
    %180 = vst [vmem:[#allocation7] sm:$0xff] %v158
    %181 = vst [vmem:[#allocation7 + $0x8] sm:$0xff] %v160
    %182 = vst [vmem:[#allocation7 + $0x10] sm:$0xff] %v164
    %183 = vst [vmem:[#allocation7 + $0x18] sm:$0xff] %v166
    %184 = vst [vmem:[#allocation7 + $0x20] sm:$0xff] %v170
    %185 = vst [vmem:[#allocation7 + $0x28] sm:$0xff] %v172
    %186 = vst [vmem:[#allocation7 + $0x30] sm:$0xff] %v176
    %187 = vst [vmem:[#allocation7 + $0x38] sm:$0xff] %v178
    // Predicated region
    $region22: #{tpu_custom_call.1} parent=1 // pred_check
      _
    $region23: #{tpu_custom_call.1} parent=1 // pred_check_branch
      %189 = sbr.rel (0) target = $region25
    $region24: #{tpu_custom_call.1} parent=1 // pred_region
      %s191 = ssub.s32 1024, 1024
      %192 = vsyncadd [#allocation4], %s191
      %s193 = sshll.u32 [#allocation7], 4
      %s194 = int_to_ptr.vmem [resolvable:$true] %s193
      %199 = dma.vmem_to_hbm [thread:$0]  %s194, 1024, %s3, [#allocation4], 256, 256, 16
    $region25: #{tpu_custom_call.1} parent=1 // pred_fallthru
      _
    // Predicated region
    $region26: #{tpu_custom_call.1} parent=1 // pred_check
      _
    $region27: #{tpu_custom_call.1} parent=1 // pred_check_branch
      %201 = sbr.rel (0) target = $region29
    $region28: #{tpu_custom_call.1} parent=1 // pred_region
      %202 = dma.done [#allocation4], 1024
    $region29: #{tpu_custom_call.1} parent=1 // pred_fallthru
      _
    %203 = vsyncpa [#allocation3], 1
    %204 = vsyncpa [#allocation6], 1
    %205 = vsyncpa [#allocation4], 1

</llo_original>
